<compile_context>
chip_gen: v7x
topology: tpu7x:2x2x1
jax: 0.10.0
libtpu: 0.0.40
codegen_flags: <defaults>
</compile_context>

<pallas_src>
import jax
import jax.numpy as jnp
from jax.experimental import pallas as pl
from jax.experimental.pallas import tpu as pltpu


def coulomb_kernel(x_ref,
                   w1_ref,
                   w2_ref, b2_ref,
                   w3_ref, b3_ref,
                   w4_ref, b4_ref,
                   w5_ref,
                   sc_ref,
                   o_ref):
    """Transposed (lane-dense) MLP tile.

    x_ref : (4, TILE_N)   rows = 3 features (standardization folded into W1) + ones row (b1)
    wK_ref: (out_k, in_k) transposed weights, resident across the grid
    bK_ref: (out_k, 1)    column biases for layers 2..4
    sc_ref: (3,) SMEM     [b5, maxy - miny, miny]
    o_ref : (1, TILE_N)   lane-dense output tile
    """
    h = x_ref[...]                                                                # (4, T)

    # Layer 1: bias folded into the ones row of the input.
    h = jnp.maximum(jnp.dot(w1_ref[...], h, preferred_element_type=jnp.float32), 0.0)                 # (20, T)
    h = jnp.maximum(jnp.dot(w2_ref[...], h, preferred_element_type=jnp.float32) + b2_ref[...], 0.0)   # (20, T)
    h = jnp.maximum(jnp.dot(w3_ref[...], h, preferred_element_type=jnp.float32) + b3_ref[...], 0.0)   # (10, T)
    h = jnp.maximum(jnp.dot(w4_ref[...], h, preferred_element_type=jnp.float32) + b4_ref[...], 0.0)   # (10, T)

    z = jnp.dot(w5_ref[...], h, preferred_element_type=jnp.float32) + sc_ref[0]   # (1, T)
    # sigmoid(z) == 0.5*tanh(0.5*z) + 0.5 : transcendental on the EUP slot.
    s = 0.5 * jnp.tanh(0.5 * z) + 0.5

    o_ref[...] = s * sc_ref[1] + sc_ref[2]


def init_params(key):
    """Deterministic init mimicking nn.Linear (uniform in +-1/sqrt(fan_in)).
    Weights stored (in, out), biases (1, out)."""
    dims = [(3, 20), (20, 20), (20, 10), (10, 10), (10, 1)]
    params = []
    for fan_in, fan_out in dims:
        key, kw, kb = jax.random.split(key, 3)
        bound = 1.0 / jnp.sqrt(float(fan_in))
        w = jax.random.uniform(kw, (fan_in, fan_out), jnp.float32, -bound, bound)
        b = jax.random.uniform(kb, (1, fan_out), jnp.float32, -bound, bound)
        params.append((w, b))
    return params


def _prep_transposed_params(params, mean, std):
    """Fold (x - mean)/std and b1 into an augmented W1 (20, 4); transpose the rest
    to (out, in) / (out, 1). Returns (flat_param_list, b5_scalar)."""
    w1, b1 = params[0]
    # NOTE: inv_std is inf if a feature is constant (matches the PyTorch reference).
    inv_std = (1.0 / std).astype(jnp.float32)                                  # (3,)
    w1t = (w1 * inv_std[:, None]).T                                            # (20, 3)
    b1_eff = b1.reshape(-1, 1) - w1.T @ (mean * inv_std).reshape(-1, 1)        # (20, 1)
    w1_aug = jnp.concatenate([w1t, b1_eff], axis=1).astype(jnp.float32)        # (20, 4)

    flat = [w1_aug]
    for w, b in params[1:-1]:
        flat.append(w.T.astype(jnp.float32))               # (out, in)
        flat.append(b.reshape(-1, 1).astype(jnp.float32))  # (out, 1)
    w5, _ = params[-1]
    flat.append(w5.T.astype(jnp.float32))                  # (1, 10)
    b5 = jnp.asarray(params[-1][1], jnp.float32).reshape(())
    return flat, b5


def coulomb_forward(x, params, mean, std, miny, maxy, max_tile=32768):
    N = x.shape[0]
    flat, b5 = _prep_transposed_params(params, mean, std)

    # Lane-dense tiling: N on the lane axis, tile a multiple of 128.
    n128 = pl.cdiv(max(N, 1), 128) * 128
    tn = min(max_tile, n128)
    grid = (pl.cdiv(n128, tn),)          # ragged trailing block handled by Pallas

    # Augmented, transposed input: transpose + ones row + 128-pad fuse into one
    # XLA pass (no zeros+scatter over the padded array).
    xa = jnp.concatenate(
        [x.T.astype(jnp.float32), jnp.ones((1, N), jnp.float32)], axis=0)      # (4, N)
    xa = jnp.pad(xa, ((0, 0), (0, n128 - N)))                                  # (4, n128)

    miny_f = jnp.asarray(miny, jnp.float32).reshape(())
    scale_f = jnp.asarray(maxy, jnp.float32).reshape(()) - miny_f
    sc = jnp.stack([b5, scale_f, miny_f])                                      # (3,) -> SMEM

    def resident(shape):
        # Full-array block, constant index map: fetched once, stays in VMEM.
        return pl.BlockSpec(shape, lambda i: (0, 0))

    in_specs = [pl.BlockSpec((4, tn), lambda i: (0, i))]
    in_specs += [resident(p.shape) for p in flat]
    in_specs += [pl.BlockSpec(memory_space=pltpu.MemorySpace.SMEM)]
    out_specs = pl.BlockSpec((1, tn), lambda i: (0, i))

    out = pl.pallas_call(
        coulomb_kernel,
        out_shape=jax.ShapeDtypeStruct((1, n128), jnp.float32),
        grid=grid,
        in_specs=in_specs,
        out_specs=out_specs,
        compiler_params=pltpu.CompilerParams(
            dimension_semantics=("parallel",),
            vmem_limit_bytes=48 * 1024 * 1024,
        ),
    )(xa, *flat, sc)

    return out[0, :N].reshape(N, 1)


def reference_forward(x, params, mean, std, miny, maxy):
    """Pure-JAX reference matching the PyTorch module's forward semantics."""
    h = (x - mean[None, :]) / std[None, :]
    for i, (w, b) in enumerate(params):
        h = h @ w + b
        if i < 4:
            h = jnp.maximum(h, 0.0)
    s = 1.0 / (1.0 + jnp.exp(-h))
    return s * (maxy - miny) + miny


if __name__ == "__main__":
    key = jax.random.PRNGKey(0)
    key, kx, ky, kp = jax.random.split(key, 4)
    params = init_params(kp)

    # (N, max_tile): single small tile; multi-step even grid; ragged trailing block.
    for N, max_tile in ((8, 32768), (700, 256), (700, 512)):
        kxn = jax.random.fold_in(kx, N)
        kyn = jax.random.fold_in(ky, N)
        x = jax.random.normal(kxn, (N, 3), jnp.float32) * 2.0 + 1.0
        y = jax.random.uniform(kyn, (N,), jnp.float32, 0.0, 10.0)

        # set_scaler semantics: per-feature mean / std (torch.std is unbiased,
        # ddof=1), plus min/max of y for output rescaling.
        mean = jnp.mean(x, axis=0)
        std = jnp.std(x, axis=0, ddof=1)
        miny = jnp.min(y)
        maxy = jnp.max(y)

        out = coulomb_forward(x, params, mean, std, miny, maxy, max_tile=max_tile)
        out = jax.block_until_ready(out)
        assert out.shape == (N, 1)

        ref = reference_forward(x, params, mean, std, miny, maxy)
        err = float(jnp.max(jnp.abs(out - ref)))
        assert jnp.allclose(out, ref, atol=1e-4, rtol=1e-4), err

    # TODO(synk): training loop (SGD/MSE in Net.train) is host-side and not a kernel.
    print("KERNEL_OK")
</pallas_src>

<mosaic_0001>
module attributes {stable_mosaic.version = 11 : i64} {
  func.func @coulomb_kernel(%arg0: i32, %arg1: memref<4x128xf32, #tpu.memory_space<vmem>>, %arg2: memref<20x4xf32, #tpu.memory_space<vmem>>, %arg3: memref<20x20xf32, #tpu.memory_space<vmem>>, %arg4: memref<20x1xf32, #tpu.memory_space<vmem>>, %arg5: memref<10x20xf32, #tpu.memory_space<vmem>>, %arg6: memref<10x1xf32, #tpu.memory_space<vmem>>, %arg7: memref<10x10xf32, #tpu.memory_space<vmem>>, %arg8: memref<10x1xf32, #tpu.memory_space<vmem>>, %arg9: memref<1x10xf32, #tpu.memory_space<vmem>>, %arg10: memref<3xf32, #tpu.memory_space<smem>>, %arg11: memref<1x128xf32, #tpu.memory_space<vmem>>) attributes {dimension_semantics = [#tpu.dimension_semantics<parallel>], iteration_bounds = array<i64: 1>, scalar_prefetch = 0 : i64, scratch_operands = 0 : i64, tpu.core_type = #tpu.core_type<tc>, window_params = [{transform_indices = @transform_0, window_bounds = array<i64: 4, 128>}, {pipeline_mode = #tpu.pipeline_mode<synchronous>, transform_indices = @transform_1, window_bounds = array<i64: 20, 4>}, {pipeline_mode = #tpu.pipeline_mode<synchronous>, transform_indices = @transform_2, window_bounds = array<i64: 20, 20>}, {pipeline_mode = #tpu.pipeline_mode<synchronous>, transform_indices = @transform_3, window_bounds = array<i64: 20, 1>}, {pipeline_mode = #tpu.pipeline_mode<synchronous>, transform_indices = @transform_4, window_bounds = array<i64: 10, 20>}, {pipeline_mode = #tpu.pipeline_mode<synchronous>, transform_indices = @transform_5, window_bounds = array<i64: 10, 1>}, {pipeline_mode = #tpu.pipeline_mode<synchronous>, transform_indices = @transform_6, window_bounds = array<i64: 10, 10>}, {pipeline_mode = #tpu.pipeline_mode<synchronous>, transform_indices = @transform_7, window_bounds = array<i64: 10, 1>}, {pipeline_mode = #tpu.pipeline_mode<synchronous>, transform_indices = @transform_8, window_bounds = array<i64: 1, 10>}, {transform_indices = @transform_9, window_bounds = array<i64: 3>}, {transform_indices = @transform_10, window_bounds = array<i64: 1, 128>}]} {
    %c0 = arith.constant 0 : index
    %c0_0 = arith.constant 0 : index
    %0 = vector.load %arg1[%c0, %c0_0] : memref<4x128xf32, #tpu.memory_space<vmem>>, vector<4x128xf32>
    %c0_1 = arith.constant 0 : index
    %c0_2 = arith.constant 0 : index
    %1 = vector.load %arg2[%c0_1, %c0_2] : memref<20x4xf32, #tpu.memory_space<vmem>>, vector<20x4xf32>
    %cst = arith.constant dense<0.000000e+00> : vector<20x128xf32>
    %2 = tpu.matmul %1, %0, %cst {dimension_numbers = #tpu.dot_dimension_numbers<[1], [0], [0], [1], [0, 0, 1, 1], [], []>} : vector<20x4xf32>, vector<4x128xf32>, vector<20x128xf32> -> vector<20x128xf32>
    %cst_3 = arith.constant 0.000000e+00 : f32
    %3 = vector.broadcast %cst_3 : f32 to vector<20x128xf32>
    %4 = arith.maximumf %2, %3 : vector<20x128xf32>
    %c0_4 = arith.constant 0 : index
    %c0_5 = arith.constant 0 : index
    %5 = vector.load %arg3[%c0_4, %c0_5] : memref<20x20xf32, #tpu.memory_space<vmem>>, vector<20x20xf32>
    %cst_6 = arith.constant dense<0.000000e+00> : vector<20x128xf32>
    %6 = tpu.matmul %5, %4, %cst_6 {dimension_numbers = #tpu.dot_dimension_numbers<[1], [0], [0], [1], [0, 0, 1, 1], [], []>} : vector<20x20xf32>, vector<20x128xf32>, vector<20x128xf32> -> vector<20x128xf32>
    %c0_7 = arith.constant 0 : index
    %c0_8 = arith.constant 0 : index
    %7 = vector.load %arg4[%c0_7, %c0_8] : memref<20x1xf32, #tpu.memory_space<vmem>>, vector<20x1xf32>
    %8 = vector.broadcast %7 : vector<20x1xf32> to vector<20x128xf32>
    %9 = arith.addf %6, %8 : vector<20x128xf32>
    %cst_9 = arith.constant 0.000000e+00 : f32
    %10 = vector.broadcast %cst_9 : f32 to vector<20x128xf32>
    %11 = arith.maximumf %9, %10 : vector<20x128xf32>
    %c0_10 = arith.constant 0 : index
    %c0_11 = arith.constant 0 : index
    %12 = vector.load %arg5[%c0_10, %c0_11] : memref<10x20xf32, #tpu.memory_space<vmem>>, vector<10x20xf32>
    %cst_12 = arith.constant dense<0.000000e+00> : vector<10x128xf32>
    %13 = tpu.matmul %12, %11, %cst_12 {dimension_numbers = #tpu.dot_dimension_numbers<[1], [0], [0], [1], [0, 0, 1, 1], [], []>} : vector<10x20xf32>, vector<20x128xf32>, vector<10x128xf32> -> vector<10x128xf32>
    %c0_13 = arith.constant 0 : index
    %c0_14 = arith.constant 0 : index
    %14 = vector.load %arg6[%c0_13, %c0_14] : memref<10x1xf32, #tpu.memory_space<vmem>>, vector<10x1xf32>
    %15 = vector.broadcast %14 : vector<10x1xf32> to vector<10x128xf32>
    %16 = arith.addf %13, %15 : vector<10x128xf32>
    %cst_15 = arith.constant 0.000000e+00 : f32
    %17 = vector.broadcast %cst_15 : f32 to vector<10x128xf32>
    %18 = arith.maximumf %16, %17 : vector<10x128xf32>
    %c0_16 = arith.constant 0 : index
    %c0_17 = arith.constant 0 : index
    %19 = vector.load %arg7[%c0_16, %c0_17] : memref<10x10xf32, #tpu.memory_space<vmem>>, vector<10x10xf32>
    %cst_18 = arith.constant dense<0.000000e+00> : vector<10x128xf32>
    %20 = tpu.matmul %19, %18, %cst_18 {dimension_numbers = #tpu.dot_dimension_numbers<[1], [0], [0], [1], [0, 0, 1, 1], [], []>} : vector<10x10xf32>, vector<10x128xf32>, vector<10x128xf32> -> vector<10x128xf32>
    %c0_19 = arith.constant 0 : index
    %c0_20 = arith.constant 0 : index
    %21 = vector.load %arg8[%c0_19, %c0_20] : memref<10x1xf32, #tpu.memory_space<vmem>>, vector<10x1xf32>
    %22 = vector.broadcast %21 : vector<10x1xf32> to vector<10x128xf32>
    %23 = arith.addf %20, %22 : vector<10x128xf32>
    %cst_21 = arith.constant 0.000000e+00 : f32
    %24 = vector.broadcast %cst_21 : f32 to vector<10x128xf32>
    %25 = arith.maximumf %23, %24 : vector<10x128xf32>
    %c0_22 = arith.constant 0 : index
    %c0_23 = arith.constant 0 : index
    %26 = vector.load %arg9[%c0_22, %c0_23] : memref<1x10xf32, #tpu.memory_space<vmem>>, vector<1x10xf32>
    %cst_24 = arith.constant dense<0.000000e+00> : vector<1x128xf32>
    %27 = tpu.matmul %26, %25, %cst_24 {dimension_numbers = #tpu.dot_dimension_numbers<[1], [0], [0], [1], [0, 0, 1, 1], [], []>} : vector<1x10xf32>, vector<10x128xf32>, vector<1x128xf32> -> vector<1x128xf32>
    %c0_25 = arith.constant 0 : index
    %28 = memref.load %arg10[%c0_25] : memref<3xf32, #tpu.memory_space<smem>>
    %29 = vector.broadcast %28 : f32 to vector<1x128xf32>
    %30 = arith.addf %27, %29 : vector<1x128xf32>
    %cst_26 = arith.constant 5.000000e-01 : f32
    %31 = vector.broadcast %cst_26 : f32 to vector<1x128xf32>
    %32 = arith.mulf %31, %30 : vector<1x128xf32>
    %33 = math.tanh %32 : vector<1x128xf32>
    %cst_27 = arith.constant 5.000000e-01 : f32
    %34 = vector.broadcast %cst_27 : f32 to vector<1x128xf32>
    %35 = arith.mulf %34, %33 : vector<1x128xf32>
    %cst_28 = arith.constant 5.000000e-01 : f32
    %36 = vector.broadcast %cst_28 : f32 to vector<1x128xf32>
    %37 = arith.addf %35, %36 : vector<1x128xf32>
    %c1 = arith.constant 1 : index
    %38 = memref.load %arg10[%c1] : memref<3xf32, #tpu.memory_space<smem>>
    %39 = vector.broadcast %38 : f32 to vector<1x128xf32>
    %40 = arith.mulf %37, %39 : vector<1x128xf32>
    %c2 = arith.constant 2 : index
    %41 = memref.load %arg10[%c2] : memref<3xf32, #tpu.memory_space<smem>>
    %42 = vector.broadcast %41 : f32 to vector<1x128xf32>
    %43 = arith.addf %40, %42 : vector<1x128xf32>
    %c0_29 = arith.constant 0 : index
    %c0_30 = arith.constant 0 : index
    %44 = vector.load %arg11[%c0_29, %c0_30] : memref<1x128xf32, #tpu.memory_space<vmem>>, vector<1x128xf32>
    tpu.vector_store %arg11[%c0_29, %c0_30], %43 {strides = array<i32>} : memref<1x128xf32, #tpu.memory_space<vmem>>, vector<1x128xf32>,
    return
  }
  func.func @transform_0(%arg0: i32) -> (i32, i32) {
    %c0_i32 = arith.constant 0 : i32
    %c0_i32_0 = arith.constant 0 : i32
    return %c0_i32, %arg0 : i32, i32
  }
  func.func @transform_1(%arg0: i32) -> (i32, i32) {
    %c0_i32 = arith.constant 0 : i32
    %c0_i32_0 = arith.constant 0 : i32
    %c0_i32_1 = arith.constant 0 : i32
    return %c0_i32, %c0_i32_0 : i32, i32
  }
  func.func @transform_2(%arg0: i32) -> (i32, i32) {
    %c0_i32 = arith.constant 0 : i32
    %c0_i32_0 = arith.constant 0 : i32
    %c0_i32_1 = arith.constant 0 : i32
    return %c0_i32, %c0_i32_0 : i32, i32
  }
  func.func @transform_3(%arg0: i32) -> (i32, i32) {
    %c0_i32 = arith.constant 0 : i32
    %c0_i32_0 = arith.constant 0 : i32
    %c0_i32_1 = arith.constant 0 : i32
    return %c0_i32, %c0_i32_0 : i32, i32
  }
  func.func @transform_4(%arg0: i32) -> (i32, i32) {
    %c0_i32 = arith.constant 0 : i32
    %c0_i32_0 = arith.constant 0 : i32
    %c0_i32_1 = arith.constant 0 : i32
    return %c0_i32, %c0_i32_0 : i32, i32
  }
  func.func @transform_5(%arg0: i32) -> (i32, i32) {
    %c0_i32 = arith.constant 0 : i32
    %c0_i32_0 = arith.constant 0 : i32
    %c0_i32_1 = arith.constant 0 : i32
    return %c0_i32, %c0_i32_0 : i32, i32
  }
  func.func @transform_6(%arg0: i32) -> (i32, i32) {
    %c0_i32 = arith.constant 0 : i32
    %c0_i32_0 = arith.constant 0 : i32
    %c0_i32_1 = arith.constant 0 : i32
    return %c0_i32, %c0_i32_0 : i32, i32
  }
  func.func @transform_7(%arg0: i32) -> (i32, i32) {
    %c0_i32 = arith.constant 0 : i32
    %c0_i32_0 = arith.constant 0 : i32
    %c0_i32_1 = arith.constant 0 : i32
    return %c0_i32, %c0_i32_0 : i32, i32
  }
  func.func @transform_8(%arg0: i32) -> (i32, i32) {
    %c0_i32 = arith.constant 0 : i32
    %c0_i32_0 = arith.constant 0 : i32
    %c0_i32_1 = arith.constant 0 : i32
    return %c0_i32, %c0_i32_0 : i32, i32
  }
  func.func @transform_9(%arg0: i32) -> i32 {
    %c0_i32 = arith.constant 0 : i32
    %c0_i32_0 = arith.constant 0 : i32
    return %c0_i32 : i32
  }
  func.func @transform_10(%arg0: i32) -> (i32, i32) {
    %c0_i32 = arith.constant 0 : i32
    %c0_i32_0 = arith.constant 0 : i32
    return %c0_i32, %arg0 : i32, i32
  }
}

</mosaic_0001>

<llo_original>
// kernel: tpu_custom_call.1
$region0: #{tpu_custom_call.1}
  #allocation0 [shape = 'u32[]', space=smem, size = 0x4, offset = 0x4, fixed_abs, tag = 'smem constant byte address 0x4 - core index']
  #allocation1 [shape = 'u32[144,128]{1,0:T(1,128)}', space=vmem, size = 0x12000, scoped, tag = 'internal scratch']
  %s0 = inlined_call_operand.vmem [shape: f32[4,128], index: 0, kind: input, shape index: {}]
  %s1 = inlined_call_operand.vmem [shape: f32[20,4], index: 1, kind: input, shape index: {}]
  %s2 = inlined_call_operand.vmem [shape: f32[20,20], index: 2, kind: input, shape index: {}]
  %s3 = inlined_call_operand.vmem [shape: f32[20,1], index: 3, kind: input, shape index: {}]
  %s4 = inlined_call_operand.vmem [shape: f32[10,20], index: 4, kind: input, shape index: {}]
  %s5 = inlined_call_operand.vmem [shape: f32[10,1], index: 5, kind: input, shape index: {}]
  %s6 = inlined_call_operand.vmem [shape: f32[10,10], index: 6, kind: input, shape index: {}]
  %s7 = inlined_call_operand.vmem [shape: f32[10,1], index: 7, kind: input, shape index: {}]
  %s8 = inlined_call_operand.vmem [shape: f32[1,10], index: 8, kind: input, shape index: {}]
  %s9 = inlined_call_operand.vmem [shape: f32[3], index: 9, kind: input, shape index: {}]
  %s10 = inlined_call_operand.hbm [shape: f32[1,128], index: 10, kind: output, shape index: {}]
  %s11 = sld [smem:[#allocation0]]
  $region54: #{tpu_custom_call.1} parent=0
    _
  %s13 = ssub.s32 1, %s11
  %s14 = scalar_select 0, %s13, %s11
  $region1: #{tpu_custom_call.1} parent=0
    #allocation2 [shape = 'u8[512]{0}', space=smem, size = 0x200, scoped, tag = 'input window, operand 9, single buffered']
    #allocation3 [shape = 's32[1]{0}', space=sflag, size = 0x4, scoped, tag = 'scoped memory for tpu_custom_call.1']
    #allocation4 [shape = 's32[1]{0}', space=sflag, size = 0x4, scoped, tag = 'scoped memory for tpu_custom_call.1']
    #allocation5 [shape = 'u8[512]{0}', space=vmem, size = 0x400, scoped, tag = 'output window, operand 0, single buffered']
    %15 = vsyncpa [#allocation4], 0
    %16 = vsyncpa [#allocation3], 0
    // Predicated region
    $region2: #{tpu_custom_call.1} parent=1 // pred_check
      _
    $region3: #{tpu_custom_call.1} parent=1 // pred_check_branch
      %18 = sbr.rel (0) target = $region5
    $region4: #{tpu_custom_call.1} parent=1 // pred_region
      _
    $region5: #{tpu_custom_call.1} parent=1 // pred_fallthru
      _
    // Predicated region
    $region6: #{tpu_custom_call.1} parent=1 // pred_check
      _
    $region7: #{tpu_custom_call.1} parent=1 // pred_check_branch
      %20 = sbr.rel (0) target = $region9
    $region8: #{tpu_custom_call.1} parent=1 // pred_region
      _
    $region9: #{tpu_custom_call.1} parent=1 // pred_fallthru
      _
    // Predicated region
    $region10: #{tpu_custom_call.1} parent=1 // pred_check
      _
    $region11: #{tpu_custom_call.1} parent=1 // pred_check_branch
      %22 = sbr.rel (0) target = $region13
    $region12: #{tpu_custom_call.1} parent=1 // pred_region
      _
    $region13: #{tpu_custom_call.1} parent=1 // pred_fallthru
      _
    // Predicated region
    $region14: #{tpu_custom_call.1} parent=1 // pred_check
      _
    $region15: #{tpu_custom_call.1} parent=1 // pred_check_branch
      %24 = sbr.rel (0) target = $region17
    $region16: #{tpu_custom_call.1} parent=1 // pred_region
      _
    $region17: #{tpu_custom_call.1} parent=1 // pred_fallthru
      _
    // Predicated region
    $region18: #{tpu_custom_call.1} parent=1 // pred_check
      _
    $region19: #{tpu_custom_call.1} parent=1 // pred_check_branch
      %26 = sbr.rel (0) target = $region21
    $region20: #{tpu_custom_call.1} parent=1 // pred_region
      _
    $region21: #{tpu_custom_call.1} parent=1 // pred_fallthru
      _
    // Predicated region
    $region22: #{tpu_custom_call.1} parent=1 // pred_check
      _
    $region23: #{tpu_custom_call.1} parent=1 // pred_check_branch
      %28 = sbr.rel (0) target = $region25
    $region24: #{tpu_custom_call.1} parent=1 // pred_region
      _
    $region25: #{tpu_custom_call.1} parent=1 // pred_fallthru
      _
    // Predicated region
    $region26: #{tpu_custom_call.1} parent=1 // pred_check
      _
    $region27: #{tpu_custom_call.1} parent=1 // pred_check_branch
      %30 = sbr.rel (0) target = $region29
    $region28: #{tpu_custom_call.1} parent=1 // pred_region
      _
    $region29: #{tpu_custom_call.1} parent=1 // pred_fallthru
      _
    // Predicated region
    $region30: #{tpu_custom_call.1} parent=1 // pred_check
      _
    $region31: #{tpu_custom_call.1} parent=1 // pred_check_branch
      %32 = sbr.rel (0) target = $region33
    $region32: #{tpu_custom_call.1} parent=1 // pred_region
      _
    $region33: #{tpu_custom_call.1} parent=1 // pred_fallthru
      _
    // Predicated region
    $region34: #{tpu_custom_call.1} parent=1 // pred_check
      _
    $region35: #{tpu_custom_call.1} parent=1 // pred_check_branch
      %34 = sbr.rel (0) target = $region37
    $region36: #{tpu_custom_call.1} parent=1 // pred_region
      _
    $region37: #{tpu_custom_call.1} parent=1 // pred_fallthru
      _
    // Predicated region
    $region38: #{tpu_custom_call.1} parent=1 // pred_check
      _
    $region39: #{tpu_custom_call.1} parent=1 // pred_check_branch
      %36 = sbr.rel (0) target = $region41
    $region40: #{tpu_custom_call.1} parent=1 // pred_region
      %s38 = ssub.s32 16, 16
      %39 = vsyncadd [#allocation4], %s38
      %s41 = sshll.u32 %s9, 4
      %s42 = int_to_ptr.vmem [resolvable:$true] %s41
      %44 = dma.vmem_to_smem %s42, 16, [#allocation2], [#allocation4]
    $region41: #{tpu_custom_call.1} parent=1 // pred_fallthru
      _
    // Predicated region
    $region42: #{tpu_custom_call.1} parent=1 // pred_check
      _
    $region43: #{tpu_custom_call.1} parent=1 // pred_check_branch
      %46 = sbr.rel (0) target = $region45
    $region44: #{tpu_custom_call.1} parent=1 // pred_region
      %47 = dma.done [#allocation4], 16
    $region45: #{tpu_custom_call.1} parent=1 // pred_fallthru
      _
    %48 = sfence
    %v49 = vld [vmem:[%s0] sm:$0xf]
    %v50 = vld [vmem:[%s1] sm:$0xff]
    %v51 = vld [vmem:[%s1 + $0x8] sm:$0xff]
    %v52 = vld [vmem:[%s1 + $0x10] sm:$0xf]
    %vm53 = vcmask 31744
    %v55 = vsel %vm53, %v50, 0
    %v58 = vsel %vm53, %v51, 0
    %v61 = vsel %vm53, %v52, 0
    %vm63 = vcmask 1043456
    %v65 = vsel %vm63, %v49, 0
    %67 = vmatprep.subr.mxu0 0.0
    %68 = vmatpush1.msra.mxu0 %v65
    %69 = vmatprep.subr.mxu0 0.0
    %70 = vmatpush1.msra.mxu0 0.0
    %71 = vmatprep.subr.mxu0 0.0
    %72 = vmatpush1.msra.mxu0 0.0
    %73 = vmatprep.subr.mxu0 0.0
    %74 = vmatpush1.msra.mxu0 0.0
    %75 = vmatprep.subr.mxu0 0.0
    %76 = vmatpush1.msra.mxu0 0.0
    %77 = vmatprep.subr.mxu0 0.0
    %78 = vmatpush1.msra.mxu0 0.0
    %79 = vmatprep.subr.mxu0 0.0
    %80 = vmatpush1.msra.mxu0 0.0
    %81 = vmatprep.subr.mxu0 0.0
    %82 = vmatpush1.msra.mxu0 0.0
    %83 = vmatprep.subr.mxu0 0.0
    %84 = vmatpush1.msra.mxu0 0.0
    %85 = vmatprep.subr.mxu0 0.0
    %86 = vmatpush1.msra.mxu0 0.0
    %87 = vmatprep.subr.mxu0 0.0
    %88 = vmatpush1.msra.mxu0 0.0
    %89 = vmatprep.subr.mxu0 0.0
    %90 = vmatpush1.msra.mxu0 0.0
    %91 = vmatprep.subr.mxu0 0.0
    %92 = vmatpush1.msra.mxu0 0.0
    %93 = vmatprep.subr.mxu0 0.0
    %94 = vmatpush1.msra.mxu0 0.0
    %95 = vmatprep.subr.mxu0 0.0
    %96 = vmatpush1.msra.mxu0 0.0
    %97 = vmatprep.subr.mxu0 0.0
    %98 = vmatpush1.msra.mxu0 0.0
    %99 = vmatprep.subr.mxu0 0.0
    %100 = vmatpush1.msra.mxu0 0.0
    %101 = vmatprep.subr.mxu0 0.0
    %102 = vmatpush1.msra.mxu0 0.0
    %103 = vmatprep.subr.mxu0 0.0
    %104 = vmatpush1.msra.mxu0 0.0
    %105 = vmatprep.subr.mxu0 0.0
    %106 = vmatpush1.msra.mxu0 0.0
    %107 = vmatprep.subr.mxu0 0.0
    %108 = vmatpush1.msra.mxu0 0.0
    %109 = vmatprep.subr.mxu0 0.0
    %110 = vmatpush1.msra.mxu0 0.0
    %111 = vmatprep.subr.mxu0 0.0
    %112 = vmatpush1.msra.mxu0 0.0
    %113 = vmatprep.subr.mxu0 0.0
    %114 = vmatpush1.msra.mxu0 0.0
    %115 = vmatprep.subr.mxu0 0.0
    %116 = vmatpush1.msra.mxu0 0.0
    %117 = vmatprep.subr.mxu0 0.0
    %118 = vmatpush1.msra.mxu0 0.0
    %119 = vmatprep.subr.mxu0 0.0
    %120 = vmatpush1.msra.mxu0 0.0
    %121 = vmatprep.subr.mxu0 0.0
    %122 = vmatpush1.msra.mxu0 0.0
    %123 = vmatprep.subr.mxu0 0.0
    %124 = vmatpush1.msra.mxu0 0.0
    %125 = vmatprep.subr.mxu0 0.0
    %126 = vmatpush1.msra.mxu0 0.0
    %127 = vmatprep.subr.mxu0 0.0
    %128 = vmatpush1.msra.mxu0 0.0
    %129 = vmatprep.subr.mxu0 0.0
    %130 = vmatpush1.msra.mxu0 0.0
    %131 = vmatprep.mubr.f32.mxu0 0.0
    %132 = vmatmul.mubr.f32.gmra.mrb[0].mxu0 %v55
    %v133 = vpop.f32.mrb[0].mxu0
    %v134 = vadd.f32 0.0, %v133
    %v135 = vpop.f32.mrb[0].mxu0
    %136 = vmatprep.mubr.f32.mxu0 0.0
    %137 = vmatmul.mubr.f32.gmra.mrb[0].mxu0 %v58
    %v138 = vpop.f32.mrb[0].mxu0
    %v139 = vadd.f32 0.0, %v138
    %v140 = vpop.f32.mrb[0].mxu0
    %141 = vmatprep.mubr.f32.mxu0 0.0
    %142 = vmatmul.mubr.f32.gmra.mrb[0].mxu0 %v61
    %v143 = vpop.f32.mrb[0].mxu0
    %v144 = vadd.f32 0.0, %v143
    %v145 = vpop.f32.mrb[0].mxu0
    %146 = vdwg.mxu0
    %v147 = vmax.f32 %v134, 0.0
    %v148 = vmax.f32 %v139, 0.0
    %v149 = vmax.f32 %v144, 0.0
    %v150 = vld [vmem:[%s2] sm:$0xff]
    %v151 = vld [vmem:[%s2 + $0x8] sm:$0xff]
    %v152 = vld [vmem:[%s2 + $0x10] sm:$0xf]
    %v153 = vld [vmem:[%s3] sm:$0xff]
    %v154 = vld [vmem:[%s3 + $0x8] sm:$0xff]
    %v155 = vld [vmem:[%s3 + $0x10] sm:$0xf]
    %157 = vset.pattern.permute.xlu0 0
    %158 = vperm.xlu0 %157, %v153
    %v159 = vpop.permute.xlu0 %158
    %162 = vset.pattern.permute.xlu0 0
    %163 = vperm.xlu0 %162, %v154
    %v164 = vpop.permute.xlu0 %163
    %167 = vset.pattern.permute.xlu0 0
    %168 = vperm.xlu0 %167, %v155
    %v169 = vpop.permute.xlu0 %168
    %vm171 = vcmask 162816
    %v173 = vsel %vm171, %v150, 0
    %v176 = vsel %vm171, %v151, 0
    %v179 = vsel %vm171, %v152, 0
    %v182 = vsel %vm63, %v149, 0
    %184 = vmatprep.subr.mxu0 0.0
    %185 = vmatpush1.msra.mxu0 %v147
    %186 = vmatprep.subr.mxu0 0.0
    %187 = vmatpush1.msra.mxu0 %v148
    %188 = vmatprep.subr.mxu0 0.0
    %189 = vmatpush1.msra.mxu0 %v182
    %190 = vmatprep.subr.mxu0 0.0
    %191 = vmatpush1.msra.mxu0 0.0
    %192 = vmatprep.subr.mxu0 0.0
    %193 = vmatpush1.msra.mxu0 0.0
    %194 = vmatprep.subr.mxu0 0.0
    %195 = vmatpush1.msra.mxu0 0.0
    %196 = vmatprep.subr.mxu0 0.0
    %197 = vmatpush1.msra.mxu0 0.0
    %198 = vmatprep.subr.mxu0 0.0
    %199 = vmatpush1.msra.mxu0 0.0
    %200 = vmatprep.subr.mxu0 0.0
    %201 = vmatpush1.msra.mxu0 0.0
    %202 = vmatprep.subr.mxu0 0.0
    %203 = vmatpush1.msra.mxu0 0.0
    %204 = vmatprep.subr.mxu0 0.0
    %205 = vmatpush1.msra.mxu0 0.0
    %206 = vmatprep.subr.mxu0 0.0
    %207 = vmatpush1.msra.mxu0 0.0
    %208 = vmatprep.subr.mxu0 0.0
    %209 = vmatpush1.msra.mxu0 0.0
    %210 = vmatprep.subr.mxu0 0.0
    %211 = vmatpush1.msra.mxu0 0.0
    %212 = vmatprep.subr.mxu0 0.0
    %213 = vmatpush1.msra.mxu0 0.0
    %214 = vmatprep.subr.mxu0 0.0
    %215 = vmatpush1.msra.mxu0 0.0
    %216 = vmatprep.subr.mxu0 0.0
    %217 = vmatpush1.msra.mxu0 0.0
    %218 = vmatprep.subr.mxu0 0.0
    %219 = vmatpush1.msra.mxu0 0.0
    %220 = vmatprep.subr.mxu0 0.0
    %221 = vmatpush1.msra.mxu0 0.0
    %222 = vmatprep.subr.mxu0 0.0
    %223 = vmatpush1.msra.mxu0 0.0
    %224 = vmatprep.subr.mxu0 0.0
    %225 = vmatpush1.msra.mxu0 0.0
    %226 = vmatprep.subr.mxu0 0.0
    %227 = vmatpush1.msra.mxu0 0.0
    %228 = vmatprep.subr.mxu0 0.0
    %229 = vmatpush1.msra.mxu0 0.0
    %230 = vmatprep.subr.mxu0 0.0
    %231 = vmatpush1.msra.mxu0 0.0
    %232 = vmatprep.subr.mxu0 0.0
    %233 = vmatpush1.msra.mxu0 0.0
    %234 = vmatprep.subr.mxu0 0.0
    %235 = vmatpush1.msra.mxu0 0.0
    %236 = vmatprep.subr.mxu0 0.0
    %237 = vmatpush1.msra.mxu0 0.0
    %238 = vmatprep.subr.mxu0 0.0
    %239 = vmatpush1.msra.mxu0 0.0
    %240 = vmatprep.subr.mxu0 0.0
    %241 = vmatpush1.msra.mxu0 0.0
    %242 = vmatprep.subr.mxu0 0.0
    %243 = vmatpush1.msra.mxu0 0.0
    %244 = vmatprep.subr.mxu0 0.0
    %245 = vmatpush1.msra.mxu0 0.0
    %246 = vmatprep.subr.mxu0 0.0
    %247 = vmatpush1.msra.mxu0 0.0
    %248 = vmatprep.mubr.f32.mxu0 0.0
    %249 = vmatmul.mubr.f32.gmra.mrb[0].mxu0 %v173
    %v250 = vpop.f32.mrb[0].mxu0
    %v251 = vadd.f32 %v159, %v250
    %v252 = vpop.f32.mrb[0].mxu0
    %253 = vmatprep.mubr.f32.mxu0 0.0
    %254 = vmatmul.mubr.f32.gmra.mrb[0].mxu0 %v176
    %v255 = vpop.f32.mrb[0].mxu0
    %v256 = vadd.f32 %v164, %v255
    %v257 = vpop.f32.mrb[0].mxu0
    %258 = vmatprep.mubr.f32.mxu0 0.0
    %259 = vmatmul.mubr.f32.gmra.mrb[0].mxu0 %v179
    %v260 = vpop.f32.mrb[0].mxu0
    %v261 = vadd.f32 %v169, %v260
    %v262 = vpop.f32.mrb[0].mxu0
    %263 = vdwg.mxu0
    %v264 = vmax.f32 %v251, 0.0
    %v265 = vmax.f32 %v256, 0.0
    %v266 = vmax.f32 %v261, 0.0
    %v267 = vld [vmem:[%s4] sm:$0xff]
    %v268 = vld [vmem:[%s4 + $0x8] sm:$0x3]
    %v269 = vld [vmem:[%s5] sm:$0xff]
    %v270 = vld [vmem:[%s5 + $0x8] sm:$0x3]
    %272 = vset.pattern.permute.xlu0 0
    %273 = vperm.xlu0 %272, %v269
    %v274 = vpop.permute.xlu0 %273
    %277 = vset.pattern.permute.xlu0 0
    %278 = vperm.xlu0 %277, %v270
    %v279 = vpop.permute.xlu0 %278
    %v282 = vsel %vm171, %v267, 0
    %v285 = vsel %vm171, %v268, 0
    %v288 = vsel %vm63, %v266, 0
    %290 = vmatprep.subr.mxu0 0.0
    %291 = vmatpush1.msra.mxu0 %v264
    %292 = vmatprep.subr.mxu0 0.0
    %293 = vmatpush1.msra.mxu0 %v265
    %294 = vmatprep.subr.mxu0 0.0
    %295 = vmatpush1.msra.mxu0 %v288
    %296 = vmatprep.subr.mxu0 0.0
    %297 = vmatpush1.msra.mxu0 0.0
    %298 = vmatprep.subr.mxu0 0.0
    %299 = vmatpush1.msra.mxu0 0.0
    %300 = vmatprep.subr.mxu0 0.0
    %301 = vmatpush1.msra.mxu0 0.0
    %302 = vmatprep.subr.mxu0 0.0
    %303 = vmatpush1.msra.mxu0 0.0
    %304 = vmatprep.subr.mxu0 0.0
    %305 = vmatpush1.msra.mxu0 0.0
    %306 = vmatprep.subr.mxu0 0.0
    %307 = vmatpush1.msra.mxu0 0.0
    %308 = vmatprep.subr.mxu0 0.0
    %309 = vmatpush1.msra.mxu0 0.0
    %310 = vmatprep.subr.mxu0 0.0
    %311 = vmatpush1.msra.mxu0 0.0
    %312 = vmatprep.subr.mxu0 0.0
    %313 = vmatpush1.msra.mxu0 0.0
    %314 = vmatprep.subr.mxu0 0.0
    %315 = vmatpush1.msra.mxu0 0.0
    %316 = vmatprep.subr.mxu0 0.0
    %317 = vmatpush1.msra.mxu0 0.0
    %318 = vmatprep.subr.mxu0 0.0
    %319 = vmatpush1.msra.mxu0 0.0
    %320 = vmatprep.subr.mxu0 0.0
    %321 = vmatpush1.msra.mxu0 0.0
    %322 = vmatprep.subr.mxu0 0.0
    %323 = vmatpush1.msra.mxu0 0.0
    %324 = vmatprep.subr.mxu0 0.0
    %325 = vmatpush1.msra.mxu0 0.0
    %326 = vmatprep.subr.mxu0 0.0
    %327 = vmatpush1.msra.mxu0 0.0
    %328 = vmatprep.subr.mxu0 0.0
    %329 = vmatpush1.msra.mxu0 0.0
    %330 = vmatprep.subr.mxu0 0.0
    %331 = vmatpush1.msra.mxu0 0.0
    %332 = vmatprep.subr.mxu0 0.0
    %333 = vmatpush1.msra.mxu0 0.0
    %334 = vmatprep.subr.mxu0 0.0
    %335 = vmatpush1.msra.mxu0 0.0
    %336 = vmatprep.subr.mxu0 0.0
    %337 = vmatpush1.msra.mxu0 0.0
    %338 = vmatprep.subr.mxu0 0.0
    %339 = vmatpush1.msra.mxu0 0.0
    %340 = vmatprep.subr.mxu0 0.0
    %341 = vmatpush1.msra.mxu0 0.0
    %342 = vmatprep.subr.mxu0 0.0
    %343 = vmatpush1.msra.mxu0 0.0
    %344 = vmatprep.subr.mxu0 0.0
    %345 = vmatpush1.msra.mxu0 0.0
    %346 = vmatprep.subr.mxu0 0.0
    %347 = vmatpush1.msra.mxu0 0.0
    %348 = vmatprep.subr.mxu0 0.0
    %349 = vmatpush1.msra.mxu0 0.0
    %350 = vmatprep.subr.mxu0 0.0
    %351 = vmatpush1.msra.mxu0 0.0
    %352 = vmatprep.subr.mxu0 0.0
    %353 = vmatpush1.msra.mxu0 0.0
    %354 = vmatprep.mubr.f32.mxu0 0.0
    %355 = vmatmul.mubr.f32.gmra.mrb[0].mxu0 %v282
    %v356 = vpop.f32.mrb[0].mxu0
    %v357 = vadd.f32 %v274, %v356
    %v358 = vpop.f32.mrb[0].mxu0
    %359 = vmatprep.mubr.f32.mxu0 0.0
    %360 = vmatmul.mubr.f32.gmra.mrb[0].mxu0 %v285
    %v361 = vpop.f32.mrb[0].mxu0
    %v362 = vadd.f32 %v279, %v361
    %v363 = vpop.f32.mrb[0].mxu0
    %364 = vdwg.mxu0
    %v365 = vmax.f32 %v357, 0.0
    %v366 = vmax.f32 %v362, 0.0
    %v367 = vld [vmem:[%s6] sm:$0xff]
    %v368 = vld [vmem:[%s6 + $0x8] sm:$0x3]
    %v369 = vld [vmem:[%s7] sm:$0xff]
    %v370 = vld [vmem:[%s7 + $0x8] sm:$0x3]
    %372 = vset.pattern.permute.xlu0 0
    %373 = vperm.xlu0 %372, %v369
    %v374 = vpop.permute.xlu0 %373
    %377 = vset.pattern.permute.xlu0 0
    %378 = vperm.xlu0 %377, %v370
    %v379 = vpop.permute.xlu0 %378
    %vm381 = vcmask 80896
    %v383 = vsel %vm381, %v367, 0
    %v386 = vsel %vm381, %v368, 0
    %vm388 = vcmask 1041408
    %v390 = vsel %vm388, %v366, 0
    %392 = vmatprep.subr.mxu0 0.0
    %393 = vmatpush1.msra.mxu0 %v365
    %394 = vmatprep.subr.mxu0 0.0
    %395 = vmatpush1.msra.mxu0 %v390
    %396 = vmatprep.subr.mxu0 0.0
    %397 = vmatpush1.msra.mxu0 0.0
    %398 = vmatprep.subr.mxu0 0.0
    %399 = vmatpush1.msra.mxu0 0.0
    %400 = vmatprep.subr.mxu0 0.0
    %401 = vmatpush1.msra.mxu0 0.0
    %402 = vmatprep.subr.mxu0 0.0
    %403 = vmatpush1.msra.mxu0 0.0
    %404 = vmatprep.subr.mxu0 0.0
    %405 = vmatpush1.msra.mxu0 0.0
    %406 = vmatprep.subr.mxu0 0.0
    %407 = vmatpush1.msra.mxu0 0.0
    %408 = vmatprep.subr.mxu0 0.0
    %409 = vmatpush1.msra.mxu0 0.0
    %410 = vmatprep.subr.mxu0 0.0
    %411 = vmatpush1.msra.mxu0 0.0
    %412 = vmatprep.subr.mxu0 0.0
    %413 = vmatpush1.msra.mxu0 0.0
    %414 = vmatprep.subr.mxu0 0.0
    %415 = vmatpush1.msra.mxu0 0.0
    %416 = vmatprep.subr.mxu0 0.0
    %417 = vmatpush1.msra.mxu0 0.0
    %418 = vmatprep.subr.mxu0 0.0
    %419 = vmatpush1.msra.mxu0 0.0
    %420 = vmatprep.subr.mxu0 0.0
    %421 = vmatpush1.msra.mxu0 0.0
    %422 = vmatprep.subr.mxu0 0.0
    %423 = vmatpush1.msra.mxu0 0.0
    %424 = vmatprep.subr.mxu0 0.0
    %425 = vmatpush1.msra.mxu0 0.0
    %426 = vmatprep.subr.mxu0 0.0
    %427 = vmatpush1.msra.mxu0 0.0
    %428 = vmatprep.subr.mxu0 0.0
    %429 = vmatpush1.msra.mxu0 0.0
    %430 = vmatprep.subr.mxu0 0.0
    %431 = vmatpush1.msra.mxu0 0.0
    %432 = vmatprep.subr.mxu0 0.0
    %433 = vmatpush1.msra.mxu0 0.0
    %434 = vmatprep.subr.mxu0 0.0
    %435 = vmatpush1.msra.mxu0 0.0
    %436 = vmatprep.subr.mxu0 0.0
    %437 = vmatpush1.msra.mxu0 0.0
    %438 = vmatprep.subr.mxu0 0.0
    %439 = vmatpush1.msra.mxu0 0.0
    %440 = vmatprep.subr.mxu0 0.0
    %441 = vmatpush1.msra.mxu0 0.0
    %442 = vmatprep.subr.mxu0 0.0
    %443 = vmatpush1.msra.mxu0 0.0
    %444 = vmatprep.subr.mxu0 0.0
    %445 = vmatpush1.msra.mxu0 0.0
    %446 = vmatprep.subr.mxu0 0.0
    %447 = vmatpush1.msra.mxu0 0.0
    %448 = vmatprep.subr.mxu0 0.0
    %449 = vmatpush1.msra.mxu0 0.0
    %450 = vmatprep.subr.mxu0 0.0
    %451 = vmatpush1.msra.mxu0 0.0
    %452 = vmatprep.subr.mxu0 0.0
    %453 = vmatpush1.msra.mxu0 0.0
    %454 = vmatprep.subr.mxu0 0.0
    %455 = vmatpush1.msra.mxu0 0.0
    %456 = vmatprep.mubr.f32.mxu0 0.0
    %457 = vmatmul.mubr.f32.gmra.mrb[0].mxu0 %v383
    %v458 = vpop.f32.mrb[0].mxu0
    %v459 = vadd.f32 %v374, %v458
    %v460 = vpop.f32.mrb[0].mxu0
    %461 = vmatprep.mubr.f32.mxu0 0.0
    %462 = vmatmul.mubr.f32.gmra.mrb[0].mxu0 %v386
    %v463 = vpop.f32.mrb[0].mxu0
    %v464 = vadd.f32 %v379, %v463
    %v465 = vpop.f32.mrb[0].mxu0
    %466 = vdwg.mxu0
    %v467 = vmax.f32 %v459, 0.0
    %v468 = vmax.f32 %v464, 0.0
    %v469 = vld [vmem:[%s8] sm:$0x1]
    %s470 = sld [smem:[#allocation2]]
    %v471 = vstv %s470
    %v473 = vsel %vm381, %v469, 0
    %v476 = vsel %vm388, %v468, 0
    %478 = vmatprep.subr.mxu0 0.0
    %479 = vmatpush1.msra.mxu0 %v467
    %480 = vmatprep.subr.mxu0 0.0
    %481 = vmatpush1.msra.mxu0 %v476
    %482 = vmatprep.subr.mxu0 0.0
    %483 = vmatpush1.msra.mxu0 0.0
    %484 = vmatprep.subr.mxu0 0.0
    %485 = vmatpush1.msra.mxu0 0.0
    %486 = vmatprep.subr.mxu0 0.0
    %487 = vmatpush1.msra.mxu0 0.0
    %488 = vmatprep.subr.mxu0 0.0
    %489 = vmatpush1.msra.mxu0 0.0
    %490 = vmatprep.subr.mxu0 0.0
    %491 = vmatpush1.msra.mxu0 0.0
    %492 = vmatprep.subr.mxu0 0.0
    %493 = vmatpush1.msra.mxu0 0.0
    %494 = vmatprep.subr.mxu0 0.0
    %495 = vmatpush1.msra.mxu0 0.0
    %496 = vmatprep.subr.mxu0 0.0
    %497 = vmatpush1.msra.mxu0 0.0
    %498 = vmatprep.subr.mxu0 0.0
    %499 = vmatpush1.msra.mxu0 0.0
    %500 = vmatprep.subr.mxu0 0.0
    %501 = vmatpush1.msra.mxu0 0.0
    %502 = vmatprep.subr.mxu0 0.0
    %503 = vmatpush1.msra.mxu0 0.0
    %504 = vmatprep.subr.mxu0 0.0
    %505 = vmatpush1.msra.mxu0 0.0
    %506 = vmatprep.subr.mxu0 0.0
    %507 = vmatpush1.msra.mxu0 0.0
    %508 = vmatprep.subr.mxu0 0.0
    %509 = vmatpush1.msra.mxu0 0.0
    %510 = vmatprep.subr.mxu0 0.0
    %511 = vmatpush1.msra.mxu0 0.0
    %512 = vmatprep.subr.mxu0 0.0
    %513 = vmatpush1.msra.mxu0 0.0
    %514 = vmatprep.subr.mxu0 0.0
    %515 = vmatpush1.msra.mxu0 0.0
    %516 = vmatprep.subr.mxu0 0.0
    %517 = vmatpush1.msra.mxu0 0.0
    %518 = vmatprep.subr.mxu0 0.0
    %519 = vmatpush1.msra.mxu0 0.0
    %520 = vmatprep.subr.mxu0 0.0
    %521 = vmatpush1.msra.mxu0 0.0
    %522 = vmatprep.subr.mxu0 0.0
    %523 = vmatpush1.msra.mxu0 0.0
    %524 = vmatprep.subr.mxu0 0.0
    %525 = vmatpush1.msra.mxu0 0.0
    %526 = vmatprep.subr.mxu0 0.0
    %527 = vmatpush1.msra.mxu0 0.0
    %528 = vmatprep.subr.mxu0 0.0
    %529 = vmatpush1.msra.mxu0 0.0
    %530 = vmatprep.subr.mxu0 0.0
    %531 = vmatpush1.msra.mxu0 0.0
    %532 = vmatprep.subr.mxu0 0.0
    %533 = vmatpush1.msra.mxu0 0.0
    %534 = vmatprep.subr.mxu0 0.0
    %535 = vmatpush1.msra.mxu0 0.0
    %536 = vmatprep.subr.mxu0 0.0
    %537 = vmatpush1.msra.mxu0 0.0
    %538 = vmatprep.subr.mxu0 0.0
    %539 = vmatpush1.msra.mxu0 0.0
    %540 = vmatprep.subr.mxu0 0.0
    %541 = vmatpush1.msra.mxu0 0.0
    %542 = vmatprep.mubr.f32.mxu0 0.0
    %543 = vmatmul.mubr.f32.gmra.mrb[0].mxu0 %v473
    %v544 = vpop.f32.mrb[0].mxu0
    %v545 = vadd.f32 %v471, %v544
    %v546 = vpop.f32.mrb[0].mxu0
    %547 = vdwg.mxu0
    %v548 = vmul.f32 %v545, 0.5
    %v549 = vtanh.pop %v548
    %v550 = vmul.f32 %v549, 0.5
    %v551 = vadd.f32 %v550, 0.5
    %s552 = sld [smem:[#allocation2 + $0x1]]
    %v553 = vstv %s552
    %v554 = vmul.f32 %v551, %v553
    %s555 = sld [smem:[#allocation2 + $0x2]]
    %v556 = vstv %s555
    %v557 = vadd.f32 %v554, %v556
    %558 = vst [vmem:[#allocation5] sm:$0x1] %v557
    // Predicated region
    $region46: #{tpu_custom_call.1} parent=1 // pred_check
      _
    $region47: #{tpu_custom_call.1} parent=1 // pred_check_branch
      %560 = sbr.rel (0) target = $region49
    $region48: #{tpu_custom_call.1} parent=1 // pred_region
      %s562 = ssub.s32 16, 16
      %563 = vsyncadd [#allocation3], %s562
      %s565 = sshll.u32 [#allocation5], 4
      %s566 = int_to_ptr.vmem [resolvable:$true] %s565
      %568 = dma.vmem_to_hbm [thread:$0]  %s566, 16, %s10, [#allocation3]
    $region49: #{tpu_custom_call.1} parent=1 // pred_fallthru
      _
    // Predicated region
    $region50: #{tpu_custom_call.1} parent=1 // pred_check
      _
    $region51: #{tpu_custom_call.1} parent=1 // pred_check_branch
      %570 = sbr.rel (0) target = $region53
    $region52: #{tpu_custom_call.1} parent=1 // pred_region
      %571 = dma.done [#allocation3], 16
    $region53: #{tpu_custom_call.1} parent=1 // pred_fallthru
      _
    %572 = vsyncpa [#allocation3], 1
    %573 = vsyncpa [#allocation4], 1

</llo_original>
